<compile_context>
chip_gen: v7x
topology: tpu7x:2x2x1
jax: 0.10.0
libtpu: 0.0.40
codegen_flags: <defaults>
</compile_context>

<pallas_src>
import functools
import math

import jax
import jax.numpy as jnp
from jax.experimental import pallas as pl
from jax.experimental.pallas import tpu as pltpu

_ALIGN = 256  # MXU-aligned on v5e (128) and v6e/v7x (256); bf16 sublane-pack safe.


def _round_up(x, m):
    return ((x + m - 1) // m) * m


def _vmem_limit_bytes():
    """Generation-aware VMEM request, leaving ~18% headroom for compiler scratch."""
    try:
        cap = pltpu.get_tpu_info().vmem_capacity_bytes
    except Exception:  # query unavailable -> conservative (v7x-safe) default
        cap = 64 * 1024 * 1024
    return int(cap * 0.82)  # ~52 MiB on v7x (64 MiB phys), ~105 MiB on v5e/v6e (128 MiB)


def g_encoder_kernel(ahat_ref, xw_ref, b_ref, poolt_ref, invc_ref, g_ref, hacc_ref):
    i = pl.program_id(1)            # row tile (within this core split)
    k = pl.program_id(2)            # contraction tile (innermost reduction axis)

    @pl.when(jnp.logical_and(i == 0, k == 0))
    def _init_out():                # fresh resident output block for this core split
        g_ref[...] = jnp.zeros_like(g_ref)

    @pl.when(k == 0)
    def _init_hacc():
        hacc_ref[...] = jnp.zeros_like(hacc_ref)

    # h_acc += Â[row_tile, k_tile] @ (xn @ W)[k_tile, :]   (bf16 MXU, f32 accumulate)
    hacc_ref[...] += jnp.dot(ahat_ref[...], xw_ref[...],
                             preferred_element_type=jnp.float32)

    @pl.when(k == pl.num_programs(2) - 1)
    def _finish_row_tile():
        h = jnp.maximum(hacc_ref[...] + b_ref[...], 0.0)          # bias + ReLU, f32
        # fused global_mean_pool accumulation: g += pool[:, row_tile] @ h
        # (pool is exact 0/1 in bf16; 1/count applied in f32 at flush)
        g_ref[...] += jax.lax.dot_general(
            poolt_ref[...], h.astype(jnp.bfloat16),
            dimension_numbers=(((0,), (0,)), ((), ())),
            preferred_element_type=jnp.float32)

    @pl.when(jnp.logical_and(i == pl.num_programs(1) - 1,
                             k == pl.num_programs(2) - 1))
    def _flush():
        g_ref[...] = g_ref[...] * invc_ref[...]                   # sum -> mean, f32


def g_encoder_forward(x, edge_index, batch, edge_weight, params, num_graphs,
                      row_tile=512, k_tile=512, core_splits=2):
    """Returns (g, k_g), each [num_graphs, nhid] float32.

    Production tiles should stay >= 256 (preferably 512+) so each grid step streams
    a few hundred KiB of Â and the per-step (~0.35 us) overhead is amortized.
    """
    del edge_weight  # GCNConv is called without edge_weight in the module's forward
    N, F = x.shape
    H = params["W"].shape[1]
    G = num_graphs

    # -------- plain-JAX glue: graph structure + BN fold (no clean Pallas equivalent) --------
    # Dense normalized adjacency Â = D^{-1/2}(A + I_remaining)D^{-1/2}; scatter-ADD
    # for duplicate edges, self-loops added only where missing (PyG gcn_norm).
    src, dst = edge_index[0], edge_index[1]
    A = jnp.zeros((N, N), jnp.float32).at[dst, src].add(1.0)       # row = target
    diag = jnp.diagonal(A)
    A = A + jnp.diag(jnp.where(diag > 0.0, 0.0, 1.0))
    deg = jnp.sum(A, axis=1)
    dinv = jax.lax.rsqrt(jnp.maximum(deg, 1e-12))
    ahat = A * dinv[:, None] * dinv[None, :]

    # Mean-pool: exact 0/1 membership matrix (transposed, [N, G]) + f32 1/count.
    onehot = (batch[:, None] == jnp.arange(G)[None, :]).astype(jnp.float32)
    counts = jnp.sum(onehot, axis=0)
    inv_counts = 1.0 / jnp.maximum(counts, 1.0)

    # BatchNorm1d (training-mode batch stats, biased variance) folded to scale/shift.
    xf = x.astype(jnp.float32)
    mean = jnp.mean(xf, axis=0, keepdims=True)
    var = jnp.mean((xf - mean) * (xf - mean), axis=0, keepdims=True)
    rstd = jax.lax.rsqrt(var + 1e-5)
    scale = params["gamma"].reshape(1, F) * rstd
    shift = params["beta"].reshape(1, F) - mean * scale
    xn = xf * scale + shift                                        # [N, F]

    # Feature transform precomputed once in f32 (N·F·H << N²·H propagation flops);
    # kernel then streams a single Â_tile @ xw matmul per step.
    xw = xn @ params["W"].astype(jnp.float32)                      # [N, H]

    # -------- tiling / padding (256-aligned; kernel VMEM independent of N) --------
    tm = _round_up(min(row_tile, N), _ALIGN)
    tk = _round_up(min(k_tile, N), _ALIGN)
    nc = core_splits if (_round_up(N, tm) // tm) >= core_splits else 1
    N_pad = _round_up(N, math.lcm(nc * tm, tk))
    rows_per_core = N_pad // (nc * tm)
    kt = N_pad // tk
    H_pad = _round_up(H, 128)
    G_pad = _round_up(G, 8)

    ahat_p = jnp.pad(ahat, ((0, N_pad - N), (0, N_pad - N))).astype(jnp.bfloat16)
    xw_p = jnp.pad(xw, ((0, N_pad - N), (0, H_pad - H))).astype(jnp.bfloat16)
    b_p = jnp.pad(params["b"].reshape(1, H).astype(jnp.float32),
                  ((0, 0), (0, H_pad - H)))
    pool_p = jnp.pad(onehot, ((0, N_pad - N), (0, G_pad - G))).astype(jnp.bfloat16)
    invc_p = jnp.pad(inv_counts, (0, G_pad - G)).reshape(G_pad, 1).astype(jnp.float32)

    r = rows_per_core  # captured by the index_maps below (Python int)

    partials = pl.pallas_call(
        g_encoder_kernel,
        out_shape=jax.ShapeDtypeStruct((nc, G_pad, H_pad), jnp.float32),
        grid=(nc, rows_per_core, kt),
        in_specs=[
            pl.BlockSpec((tm, tk), lambda c, i, k: (c * r + i, k)),     # Â tile
            pl.BlockSpec((tk, H_pad), lambda c, i, k: (k, 0)),          # xw k-slice
            pl.BlockSpec((1, H_pad), lambda c, i, k: (0, 0)),           # bias
            pl.BlockSpec((tm, G_pad), lambda c, i, k: (c * r + i, 0)),  # pool rows
            pl.BlockSpec((G_pad, 1), lambda c, i, k: (0, 0)),           # 1/count
        ],
        out_specs=pl.BlockSpec((None, G_pad, H_pad), lambda c, i, k: (c, 0, 0)),
        scratch_shapes=[pltpu.VMEM((tm, H_pad), jnp.float32)],
        compiler_params=pltpu.CompilerParams(
            dimension_semantics=("parallel", "arbitrary", "arbitrary"),
            vmem_limit_bytes=_vmem_limit_bytes(),
        ),
    )(ahat_p, xw_p, b_p, pool_p, invc_p)

    g = jnp.sum(partials, axis=0)[:G, :H]   # combine per-core partial means
    k_g = g  # gcn branch: k_x == x, so global_mean_pool gives the same tensor
    return g, k_g


if __name__ == "__main__":
    # Shapes consistent with the module's forward: N nodes, F = num_features,
    # H = nhid, G graphs, 2*E_half edges after ToUndirected symmetrization.
    N, F, H, G = 300, 16, 32, 2
    E_half = 400

    key = jax.random.PRNGKey(0)
    kx, ke, kw, kb = jax.random.split(key, 4)

    x = jax.random.normal(kx, (N, F), dtype=jnp.float32)

    src = jax.random.randint(ke, (E_half,), 0, N)
    dst = jax.random.randint(jax.random.fold_in(ke, 1), (E_half,), 0, N)
    edge_index = jnp.stack(
        [jnp.concatenate([src, dst]), jnp.concatenate([dst, src])], axis=0)
    edge_weight = jnp.ones((2 * E_half,), dtype=jnp.float32)

    # Two graphs of 150 nodes each.
    batch = jnp.concatenate(
        [jnp.zeros((N // 2,), jnp.int32), jnp.ones((N - N // 2,), jnp.int32)])

    params = {
        "gamma": jnp.ones((F,), jnp.float32),
        "beta": jnp.zeros((F,), jnp.float32),
        "W": jax.random.normal(kw, (F, H), dtype=jnp.float32) * (1.0 / F ** 0.5),
        "b": jax.random.normal(kb, (H,), dtype=jnp.float32) * 0.01,
    }

    # 256-wide tiles so the demo exercises k-tiled accumulation, the row-tile
    # mean-pool reduction AND the 2-way core split: grid = (2, 1, 2).
    fwd = functools.partial(g_encoder_forward, row_tile=256, k_tile=256)
    g, k_g = fwd(x, edge_index, batch, edge_weight, params, G)
    jax.block_until_ready((g, k_g))
    assert g.shape == (G, H) and k_g.shape == (G, H)

    # Correctness vs a pure-JAX f32 reference (kernel uses bf16 MXU operands).
    xf = x.astype(jnp.float32)
    mean = xf.mean(0, keepdims=True)
    var = ((xf - mean) ** 2).mean(0, keepdims=True)
    xn_ref = (xf - mean) * jax.lax.rsqrt(var + 1e-5) * params["gamma"] + params["beta"]
    A = jnp.zeros((N, N), jnp.float32).at[edge_index[1], edge_index[0]].add(1.0)
    A = A + jnp.diag(jnp.where(jnp.diagonal(A) > 0, 0.0, 1.0))
    dinv = jax.lax.rsqrt(jnp.maximum(A.sum(1), 1e-12))
    ahat_ref = A * dinv[:, None] * dinv[None, :]
    h_ref = jnp.maximum(ahat_ref @ xn_ref @ params["W"] + params["b"], 0.0)
    onehot = (batch[:, None] == jnp.arange(G)[None, :]).astype(jnp.float32)
    pool_ref = onehot / jnp.maximum(onehot.sum(0, keepdims=True), 1.0)
    g_ref = pool_ref.T @ h_ref
    err = float(jnp.max(jnp.abs(g - g_ref)))
    assert err < 5e-2, f"max abs error vs f32 reference too large: {err}"

    print("KERNEL_OK")
</pallas_src>

<mosaic_0001>
module attributes {stable_mosaic.version = 11 : i64} {
  func.func @g_encoder_kernel(%arg0: i32, %arg1: i32, %arg2: i32, %arg3: memref<256x256xbf16, #tpu.memory_space<vmem>>, %arg4: memref<256x128xbf16, #tpu.memory_space<vmem>>, %arg5: memref<1x128xf32, #tpu.memory_space<vmem>>, %arg6: memref<256x8xbf16, #tpu.memory_space<vmem>>, %arg7: memref<8x1xf32, #tpu.memory_space<vmem>>, %arg8: memref<1x8x128xf32, #tpu.memory_space<vmem>>, %arg9: memref<256x128xf32, #tpu.memory_space<vmem>>) attributes {dimension_semantics = [#tpu.dimension_semantics<parallel>, #tpu.dimension_semantics<arbitrary>, #tpu.dimension_semantics<arbitrary>], iteration_bounds = array<i64: 2, 1, 2>, scalar_prefetch = 0 : i64, scratch_operands = 1 : i64, tpu.core_type = #tpu.core_type<tc>, window_params = [{transform_indices = @transform_0, window_bounds = array<i64: 256, 256>}, {transform_indices = @transform_1, window_bounds = array<i64: 256, 128>}, {pipeline_mode = #tpu.pipeline_mode<synchronous>, transform_indices = @transform_2, window_bounds = array<i64: 1, 128>}, {transform_indices = @transform_3, window_bounds = array<i64: 256, 8>}, {pipeline_mode = #tpu.pipeline_mode<synchronous>, transform_indices = @transform_4, window_bounds = array<i64: 8, 1>}, {transform_indices = @transform_5, window_bounds = array<i64: 1, 8, 128>}]} {
    %c0_i32 = arith.constant 0 : i32
    %0 = arith.cmpi eq, %arg1, %c0_i32 : i32
    %c0_i32_0 = arith.constant 0 : i32
    %1 = arith.cmpi eq, %arg2, %c0_i32_0 : i32
    %2 = arith.andi %0, %1 : i1
    %3 = arith.extui %2 : i1 to i32
    %c0_i32_1 = arith.constant 0 : i32
    %4 = arith.cmpi ne, %3, %c0_i32_1 : i32
    scf.if %4 {
      %cst_15 = arith.constant 0.000000e+00 : f32
      %22 = vector.broadcast %cst_15 : f32 to vector<8x128xf32>
      %c0_16 = arith.constant 0 : index
      %c0_17 = arith.constant 0 : index
      %c0_18 = arith.constant 0 : index
      %23 = vector.load %arg8[%c0_16, %c0_17, %c0_18] : memref<1x8x128xf32, #tpu.memory_space<vmem>>, vector<1x8x128xf32>
      %24 = vector.shape_cast %23 : vector<1x8x128xf32> to vector<8x128xf32>
      %25 = vector.shape_cast %22 : vector<8x128xf32> to vector<1x8x128xf32>
      tpu.vector_store %arg8[%c0_16, %c0_17, %c0_18], %25 {strides = array<i32>} : memref<1x8x128xf32, #tpu.memory_space<vmem>>, vector<1x8x128xf32>,
    } else {
    }
    %c0_i32_2 = arith.constant 0 : i32
    %5 = arith.cmpi eq, %arg2, %c0_i32_2 : i32
    %6 = arith.extui %5 : i1 to i32
    %c0_i32_3 = arith.constant 0 : i32
    %7 = arith.cmpi ne, %6, %c0_i32_3 : i32
    scf.if %7 {
      %cst_15 = arith.constant 0.000000e+00 : f32
      %22 = vector.broadcast %cst_15 : f32 to vector<256x128xf32>
      %c0_16 = arith.constant 0 : index
      %c0_17 = arith.constant 0 : index
      %23 = vector.load %arg9[%c0_16, %c0_17] : memref<256x128xf32, #tpu.memory_space<vmem>>, vector<256x128xf32>
      tpu.vector_store %arg9[%c0_16, %c0_17], %22 {strides = array<i32>} : memref<256x128xf32, #tpu.memory_space<vmem>>, vector<256x128xf32>,
    } else {
    }
    %c0 = arith.constant 0 : index
    %c0_4 = arith.constant 0 : index
    %8 = vector.load %arg9[%c0, %c0_4] : memref<256x128xf32, #tpu.memory_space<vmem>>, vector<256x128xf32>
    %c0_5 = arith.constant 0 : index
    %c0_6 = arith.constant 0 : index
    %9 = vector.load %arg3[%c0_5, %c0_6] : memref<256x256xbf16, #tpu.memory_space<vmem>>, vector<256x256xbf16>
    %c0_7 = arith.constant 0 : index
    %c0_8 = arith.constant 0 : index
    %10 = vector.load %arg4[%c0_7, %c0_8] : memref<256x128xbf16, #tpu.memory_space<vmem>>, vector<256x128xbf16>
    %cst = arith.constant dense<0.000000e+00> : vector<256x128xf32>
    %11 = tpu.matmul %9, %10, %cst {dimension_numbers = #tpu.dot_dimension_numbers<[1], [0], [0], [1], [0, 0, 1, 1], [], []>} : vector<256x256xbf16>, vector<256x128xbf16>, vector<256x128xf32> -> vector<256x128xf32>
    %12 = arith.addf %8, %11 : vector<256x128xf32>
    %c0_9 = arith.constant 0 : index
    %c0_10 = arith.constant 0 : index
    %13 = vector.load %arg9[%c0_9, %c0_10] : memref<256x128xf32, #tpu.memory_space<vmem>>, vector<256x128xf32>
    tpu.vector_store %arg9[%c0_9, %c0_10], %12 {strides = array<i32>} : memref<256x128xf32, #tpu.memory_space<vmem>>, vector<256x128xf32>,
    %c1_i32 = arith.constant 1 : i32
    %14 = arith.cmpi eq, %arg2, %c1_i32 : i32
    %15 = arith.extui %14 : i1 to i32
    %c0_i32_11 = arith.constant 0 : i32
    %16 = arith.cmpi ne, %15, %c0_i32_11 : i32
    scf.if %16 {
      %c0_15 = arith.constant 0 : index
      %c0_16 = arith.constant 0 : index
      %22 = vector.load %arg9[%c0_15, %c0_16] : memref<256x128xf32, #tpu.memory_space<vmem>>, vector<256x128xf32>
      %c0_17 = arith.constant 0 : index
      %c0_18 = arith.constant 0 : index
      %23 = vector.load %arg5[%c0_17, %c0_18] : memref<1x128xf32, #tpu.memory_space<vmem>>, vector<1x128xf32>
      %24 = vector.broadcast %23 : vector<1x128xf32> to vector<256x128xf32>
      %25 = arith.addf %22, %24 : vector<256x128xf32>
      %cst_19 = arith.constant 0.000000e+00 : f32
      %26 = vector.broadcast %cst_19 : f32 to vector<256x128xf32>
      %27 = arith.maximumf %25, %26 : vector<256x128xf32>
      %c0_20 = arith.constant 0 : index
      %c0_21 = arith.constant 0 : index
      %c0_22 = arith.constant 0 : index
      %28 = vector.load %arg8[%c0_20, %c0_21, %c0_22] : memref<1x8x128xf32, #tpu.memory_space<vmem>>, vector<1x8x128xf32>
      %29 = vector.shape_cast %28 : vector<1x8x128xf32> to vector<8x128xf32>
      %c0_23 = arith.constant 0 : index
      %c0_24 = arith.constant 0 : index
      %30 = vector.load %arg6[%c0_23, %c0_24] : memref<256x8xbf16, #tpu.memory_space<vmem>>, vector<256x8xbf16>
      %31 = arith.truncf %27 : vector<256x128xf32> to vector<256x128xbf16>
      %cst_25 = arith.constant dense<0.000000e+00> : vector<8x128xf32>
      %32 = tpu.matmul %30, %31, %cst_25 {dimension_numbers = #tpu.dot_dimension_numbers<[0], [0], [1], [1], [0, 1, 1, 1], [], []>} : vector<256x8xbf16>, vector<256x128xbf16>, vector<8x128xf32> -> vector<8x128xf32>
      %33 = arith.addf %29, %32 : vector<8x128xf32>
      %c0_26 = arith.constant 0 : index
      %c0_27 = arith.constant 0 : index
      %c0_28 = arith.constant 0 : index
      %34 = vector.load %arg8[%c0_26, %c0_27, %c0_28] : memref<1x8x128xf32, #tpu.memory_space<vmem>>, vector<1x8x128xf32>
      %35 = vector.shape_cast %34 : vector<1x8x128xf32> to vector<8x128xf32>
      %36 = vector.shape_cast %33 : vector<8x128xf32> to vector<1x8x128xf32>
      tpu.vector_store %arg8[%c0_26, %c0_27, %c0_28], %36 {strides = array<i32>} : memref<1x8x128xf32, #tpu.memory_space<vmem>>, vector<1x8x128xf32>,
    } else {
    }
    %c0_i32_12 = arith.constant 0 : i32
    %17 = arith.cmpi eq, %arg1, %c0_i32_12 : i32
    %c1_i32_13 = arith.constant 1 : i32
    %18 = arith.cmpi eq, %arg2, %c1_i32_13 : i32
    %19 = arith.andi %17, %18 : i1
    %20 = arith.extui %19 : i1 to i32
    %c0_i32_14 = arith.constant 0 : i32
    %21 = arith.cmpi ne, %20, %c0_i32_14 : i32
    scf.if %21 {
      %c0_15 = arith.constant 0 : index
      %c0_16 = arith.constant 0 : index
      %c0_17 = arith.constant 0 : index
      %22 = vector.load %arg8[%c0_15, %c0_16, %c0_17] : memref<1x8x128xf32, #tpu.memory_space<vmem>>, vector<1x8x128xf32>
      %23 = vector.shape_cast %22 : vector<1x8x128xf32> to vector<8x128xf32>
      %c0_18 = arith.constant 0 : index
      %c0_19 = arith.constant 0 : index
      %24 = vector.load %arg7[%c0_18, %c0_19] : memref<8x1xf32, #tpu.memory_space<vmem>>, vector<8x1xf32>
      %25 = vector.broadcast %24 : vector<8x1xf32> to vector<8x128xf32>
      %26 = arith.mulf %23, %25 : vector<8x128xf32>
      %c0_20 = arith.constant 0 : index
      %c0_21 = arith.constant 0 : index
      %c0_22 = arith.constant 0 : index
      %27 = vector.load %arg8[%c0_20, %c0_21, %c0_22] : memref<1x8x128xf32, #tpu.memory_space<vmem>>, vector<1x8x128xf32>
      %28 = vector.shape_cast %27 : vector<1x8x128xf32> to vector<8x128xf32>
      %29 = vector.shape_cast %26 : vector<8x128xf32> to vector<1x8x128xf32>
      tpu.vector_store %arg8[%c0_20, %c0_21, %c0_22], %29 {strides = array<i32>} : memref<1x8x128xf32, #tpu.memory_space<vmem>>, vector<1x8x128xf32>,
    } else {
    }
    return
  }
  func.func @transform_0(%arg0: i32, %arg1: i32, %arg2: i32) -> (i32, i32) {
    %c1_i32 = arith.constant 1 : i32
    %0 = arith.muli %arg0, %c1_i32 : i32
    %1 = arith.addi %0, %arg1 : i32
    %c0_i32 = arith.constant 0 : i32
    return %1, %arg2 : i32, i32
  }
  func.func @transform_1(%arg0: i32, %arg1: i32, %arg2: i32) -> (i32, i32) {
    %c0_i32 = arith.constant 0 : i32
    %c0_i32_0 = arith.constant 0 : i32
    return %arg2, %c0_i32 : i32, i32
  }
  func.func @transform_2(%arg0: i32, %arg1: i32, %arg2: i32) -> (i32, i32) {
    %c0_i32 = arith.constant 0 : i32
    %c0_i32_0 = arith.constant 0 : i32
    %c0_i32_1 = arith.constant 0 : i32
    return %c0_i32, %c0_i32_0 : i32, i32
  }
  func.func @transform_3(%arg0: i32, %arg1: i32, %arg2: i32) -> (i32, i32) {
    %c1_i32 = arith.constant 1 : i32
    %0 = arith.muli %arg0, %c1_i32 : i32
    %1 = arith.addi %0, %arg1 : i32
    %c0_i32 = arith.constant 0 : i32
    %c0_i32_0 = arith.constant 0 : i32
    return %1, %c0_i32 : i32, i32
  }
  func.func @transform_4(%arg0: i32, %arg1: i32, %arg2: i32) -> (i32, i32) {
    %c0_i32 = arith.constant 0 : i32
    %c0_i32_0 = arith.constant 0 : i32
    %c0_i32_1 = arith.constant 0 : i32
    return %c0_i32, %c0_i32_0 : i32, i32
  }
  func.func @transform_5(%arg0: i32, %arg1: i32, %arg2: i32) -> (i32, i32, i32) {
    %c0_i32 = arith.constant 0 : i32
    %c0_i32_0 = arith.constant 0 : i32
    %c0_i32_1 = arith.constant 0 : i32
    return %arg0, %c0_i32, %c0_i32_0 : i32, i32, i32
  }
}

</mosaic_0001>

<llo_original>
// kernel: tpu_custom_call.1
$region0: #{tpu_custom_call.1}
  #allocation0 [shape = 'u32[]', space=smem, size = 0x4, offset = 0x4, fixed_abs, tag = 'smem constant byte address 0x4 - core index']
  #allocation1 [shape = 'u32[144,128]{1,0:T(1,128)}', space=vmem, size = 0x12000, scoped, tag = 'internal scratch']
  #allocation2 [shape = 'f32[256,128]{1,0:T(8,128)}', space=vmem, size = 0x20000, scoped, tag = 'scratch operand']
  %s0 = inlined_call_operand.hbm [shape: bf16[512,512], index: 0, kind: input, shape index: {}]
  %s1 = inlined_call_operand.vmem [shape: bf16[512,128], index: 1, kind: input, shape index: {}]
  %s2 = inlined_call_operand.vmem [shape: f32[1,128], index: 2, kind: input, shape index: {}]
  %s3 = inlined_call_operand.vmem [shape: bf16[512,8], index: 3, kind: input, shape index: {}]
  %s4 = inlined_call_operand.vmem [shape: f32[8,1], index: 4, kind: input, shape index: {}]
  %s5 = inlined_call_operand.hbm [shape: f32[2,8,128], index: 5, kind: output, shape index: {}]
  %s6 = sld [smem:[#allocation0]]
  $region73: #{tpu_custom_call.1} parent=0
    _
  %s8 = ssub.s32 1, %s6
  %s9 = scalar_select 0, %s8, %s6
  $region1: #{tpu_custom_call.1} parent=0
    #allocation3 [shape = 'u8[262144]{0}', space=vmem, size = 0x40000, scoped, tag = 'input window, operand 0']
    #allocation4 [shape = 's32[2]{0}', space=sflag, size = 0x8, scoped, tag = 'scoped memory for tpu_custom_call.1']
    #allocation5 [shape = 's32[2]{0}', space=sflag, size = 0x8, scoped, tag = 'scoped memory for tpu_custom_call.1']
    #allocation6 [shape = 'u8[8192]{0}', space=vmem, size = 0x2000, scoped, tag = 'output window, operand 0']
    %10 = vsyncpa [#allocation4], 0
    %s11 = scalar_lea.sflag [#allocation4], 1
    %12 = vsyncpa %s11, 0
    %13 = vsyncpa [#allocation5], 0
    %s14 = scalar_lea.sflag [#allocation5], 1
    %15 = vsyncpa %s14, 0
    loop: start=0, step=1, limit=6
    $region2: #{tpu_custom_call.1} parent=1 // loop_pre_header
      _
    $region3: #{tpu_custom_call.1} parent=1 // loop_header
      %s17 = sphi 0, %s21
      %p18 = scmp.ge.s32.totalorder %s17, 6
      %s24 = sphi 0, %s43
      %s25 = sphi 0, %s39
      %s26 = sphi 0, %s35
      %s27 = sphi 0, %s24
      %s28 = sphi 0, %s25
      %s29 = sphi 0, %s26
      %s30 = sphi 0, %s27
      %s31 = sphi 0, %s28
      %s32 = sphi 0, %s29
      %s50 = sphi 0, %s52
      %s53 = sphi 0, %s50
      %s54 = sphi 0, %s53
      %s70 = sphi 0, %s54
      %s76 = sphi 0, %s78
      %s79 = sphi 0, %s76
      %s80 = sphi 0, %s79
      %s96 = sphi 0, %s80
      %s100 = sphi 0, %s100
      %s102 = sphi 0, %s100
      %s103 = sphi 0, %s102
      %s117 = sphi 0, %s103
      %s125 = sphi 0, %s127
      %s128 = sphi 0, %s125
      %s129 = sphi 0, %s128
      %s145 = sphi 0, %s129
      %s149 = sphi 0, %s149
      %s151 = sphi 0, %s149
      %s152 = sphi 0, %s151
      %s166 = sphi 0, %s152
      %s172 = sphi 0, %s174
      %s175 = sphi 0, %s172
      %s176 = sphi 0, %s175
      %s192 = sphi 0, %s176
    $region4: #{tpu_custom_call.1} parent=1 // loop_header_branch
      %20 = sbr.rel (%p18) target = $region8
    $region5: #{tpu_custom_call.1} parent=1 // loop_body
      %s22 = ssub.s32 %s17, 1
      %s23 = ssub.s32 %s17, 2
      %s33 = sadd.s32 1, %s26
      %p34 = scmp.ge.s32.totalorder %s33, 2
      %s35 = scalar_select %p34, 0, %s33
      %s36 = sadd.s32 1, %s25
      %s37 = scalar_select %p34, %s36, %s25
      %p38 = scmp.ge.s32.totalorder %s37, 1
      %s39 = scalar_select %p38, 0, %s37
      %s40 = sadd.s32 1, %s24
      %s41 = scalar_select %p38, %s40, %s24
      %p42 = scmp.ge.s32.totalorder %s41, 2
      %s43 = scalar_select %p42, 0, %s41
      %s44 = sadd.s32 %s24, %s25
      %s45 = sadd.s32 %s43, %s39
      %s46 = ssub.s32 %s44, %s45
      %s47 = ssub.s32 %s26, %s35
      %s48 = sor.u32 %s46, %s47
      %p49 = scmp.eq.s32.totalorder %s48, 0
      %s51 = sadd.s32 %s50, 1
      %s52 = scalar_select %p49, %s50, %s51
      %p55 = pneg %p49
      %p56 = scmp.eq.s32.totalorder %s17, 3
      %p57 = por %p55, %p56
      %p58 = scmp.ne.s32.totalorder %s50, %s53
      %p59 = scmp.eq.s32.totalorder %s17, 0
      %p60 = por %p58, %p59
      %p61 = scmp.ne.s32.totalorder %s50, %s53
      %p62 = scmp.eq.s32.totalorder %s22, 3
      %p63 = por %p61, %p62
      %p64 = scmp.ne.s32.totalorder %s53, %s54
      %p65 = scmp.eq.s32.totalorder %s22, 0
      %p66 = por %p64, %p65
      %p67 = scmp.ne.s32.totalorder %s53, %s54
      %p68 = scmp.eq.s32.totalorder %s23, 3
      %p69 = por %p67, %p68
      %p71 = scmp.ne.s32.totalorder %s54, %s70
      %p72 = scmp.eq.s32.totalorder %s23, 0
      %p73 = por %p71, %p72
      %s74 = ssub.s32 %s26, %s35
      %p75 = scmp.eq.s32.totalorder %s74, 0
      %s77 = sadd.s32 %s76, 1
      %s78 = scalar_select %p75, %s76, %s77
      %p81 = pneg %p75
      %p82 = scmp.eq.s32.totalorder %s17, 3
      %p83 = por %p81, %p82
      %p84 = scmp.ne.s32.totalorder %s76, %s79
      %p85 = scmp.eq.s32.totalorder %s17, 0
      %p86 = por %p84, %p85
      %p87 = scmp.ne.s32.totalorder %s76, %s79
      %p88 = scmp.eq.s32.totalorder %s22, 3
      %p89 = por %p87, %p88
      %p90 = scmp.ne.s32.totalorder %s79, %s80
      %p91 = scmp.eq.s32.totalorder %s22, 0
      %p92 = por %p90, %p91
      %p93 = scmp.ne.s32.totalorder %s79, %s80
      %p94 = scmp.eq.s32.totalorder %s23, 3
      %p95 = por %p93, %p94
      %p97 = scmp.ne.s32.totalorder %s80, %s96
      %p98 = scmp.eq.s32.totalorder %s23, 0
      %p99 = por %p97, %p98
      %s101 = sadd.s32 %s100, 1
      %p104 = scmp.eq.s32.totalorder %s17, 3
      %p105 = scmp.ne.s32.totalorder %s100, %s102
      %p106 = scmp.eq.s32.totalorder %s17, 0
      %p107 = por %p105, %p106
      %p108 = scmp.ne.s32.totalorder %s100, %s102
      %p109 = scmp.eq.s32.totalorder %s22, 3
      %p110 = por %p108, %p109
      %p111 = scmp.ne.s32.totalorder %s102, %s103
      %p112 = scmp.eq.s32.totalorder %s22, 0
      %p113 = por %p111, %p112
      %p114 = scmp.ne.s32.totalorder %s102, %s103
      %p115 = scmp.eq.s32.totalorder %s23, 3
      %p116 = por %p114, %p115
      %p118 = scmp.ne.s32.totalorder %s103, %s117
      %p119 = scmp.eq.s32.totalorder %s23, 0
      %p120 = por %p118, %p119
      %s121 = sadd.s32 %s24, %s25
      %s122 = sadd.s32 %s43, %s39
      %s123 = ssub.s32 %s121, %s122
      %p124 = scmp.eq.s32.totalorder %s123, 0
      %s126 = sadd.s32 %s125, 1
      %s127 = scalar_select %p124, %s125, %s126
      %p130 = pneg %p124
      %p131 = scmp.eq.s32.totalorder %s17, 3
      %p132 = por %p130, %p131
      %p133 = scmp.ne.s32.totalorder %s125, %s128
      %p134 = scmp.eq.s32.totalorder %s17, 0
      %p135 = por %p133, %p134
      %p136 = scmp.ne.s32.totalorder %s125, %s128
      %p137 = scmp.eq.s32.totalorder %s22, 3
      %p138 = por %p136, %p137
      %p139 = scmp.ne.s32.totalorder %s128, %s129
      %p140 = scmp.eq.s32.totalorder %s22, 0
      %p141 = por %p139, %p140
      %p142 = scmp.ne.s32.totalorder %s128, %s129
      %p143 = scmp.eq.s32.totalorder %s23, 3
      %p144 = por %p142, %p143
      %p146 = scmp.ne.s32.totalorder %s129, %s145
      %p147 = scmp.eq.s32.totalorder %s23, 0
      %p148 = por %p146, %p147
      %s150 = sadd.s32 %s149, 1
      %p153 = scmp.eq.s32.totalorder %s17, 3
      %p154 = scmp.ne.s32.totalorder %s149, %s151
      %p155 = scmp.eq.s32.totalorder %s17, 0
      %p156 = por %p154, %p155
      %p157 = scmp.ne.s32.totalorder %s149, %s151
      %p158 = scmp.eq.s32.totalorder %s22, 3
      %p159 = por %p157, %p158
      %p160 = scmp.ne.s32.totalorder %s151, %s152
      %p161 = scmp.eq.s32.totalorder %s22, 0
      %p162 = por %p160, %p161
      %p163 = scmp.ne.s32.totalorder %s151, %s152
      %p164 = scmp.eq.s32.totalorder %s23, 3
      %p165 = por %p163, %p164
      %p167 = scmp.ne.s32.totalorder %s152, %s166
      %p168 = scmp.eq.s32.totalorder %s23, 0
      %p169 = por %p167, %p168
      %s170 = ssub.s32 %s24, %s43
      %p171 = scmp.eq.s32.totalorder %s170, 0
      %s173 = sadd.s32 %s172, 1
      %s174 = scalar_select %p171, %s172, %s173
      %p177 = pneg %p171
      %p178 = scmp.eq.s32.totalorder %s17, 3
      %p179 = por %p177, %p178
      %p180 = scmp.ne.s32.totalorder %s172, %s175
      %p181 = scmp.eq.s32.totalorder %s17, 0
      %p182 = por %p180, %p181
      %p183 = scmp.ne.s32.totalorder %s172, %s175
      %p184 = scmp.eq.s32.totalorder %s22, 3
      %p185 = por %p183, %p184
      %p186 = scmp.ne.s32.totalorder %s175, %s176
      %p187 = scmp.eq.s32.totalorder %s22, 0
      %p188 = por %p186, %p187
      %p189 = scmp.ne.s32.totalorder %s175, %s176
      %p190 = scmp.eq.s32.totalorder %s23, 3
      %p191 = por %p189, %p190
      %p193 = scmp.ne.s32.totalorder %s176, %s192
      %p194 = scmp.eq.s32.totalorder %s23, 0
      %p195 = por %p193, %p194
      %p196 = scmp.le.s32.totalorder 1, %s17
      %p197 = scmp.lt.s32.totalorder %s17, 5
      %p198 = pnand %p196, %p197
      %p199 = pneg %p198
      // Predicated region
      $region9: #{tpu_custom_call.1} parent=5 // pred_check
        _
      $region10: #{tpu_custom_call.1} parent=5 // pred_check_branch
        %201 = sbr.rel (%p198) target = $region12
      $region11: #{tpu_custom_call.1} parent=5 // pred_region
        %s202 = ssub.s32 %s17, 1
        // Predicated region
        $region13: #{tpu_custom_call.1} parent=11 // pred_check
          %p203 = pneg %p113
        $region14: #{tpu_custom_call.1} parent=11 // pred_check_branch
          %205 = sbr.rel (%p203) target = $region16
        $region15: #{tpu_custom_call.1} parent=11 // pred_region
          _
        $region16: #{tpu_custom_call.1} parent=11 // pred_fallthru
          _
        // Predicated region
        $region17: #{tpu_custom_call.1} parent=11 // pred_check
          %p206 = pneg %p162
        $region18: #{tpu_custom_call.1} parent=11 // pred_check_branch
          %208 = sbr.rel (%p206) target = $region20
        $region19: #{tpu_custom_call.1} parent=11 // pred_region
          _
        $region20: #{tpu_custom_call.1} parent=11 // pred_fallthru
          _
      $region12: #{tpu_custom_call.1} parent=5 // pred_fallthru
        _
      %p209 = scmp.lt.s32.totalorder %s17, 4
      // Predicated region
      $region21: #{tpu_custom_call.1} parent=5 // pred_check
        %p210 = pneg %p209
      $region22: #{tpu_custom_call.1} parent=5 // pred_check_branch
        %212 = sbr.rel (%p210) target = $region24
      $region23: #{tpu_custom_call.1} parent=5 // pred_region
        // Predicated region
        $region25: #{tpu_custom_call.1} parent=23 // pred_check
          %p213 = pneg %p60
        $region26: #{tpu_custom_call.1} parent=23 // pred_check_branch
          %215 = sbr.rel (%p213) target = $region28
        $region27: #{tpu_custom_call.1} parent=23 // pred_region
          %s216 = sand.u32 %s50, 1
          %s217 = scalar_lea.sflag [#allocation4], %s216
          %s218 = sand.u32 %s50, 1
          %s219 = smul.addr %s218, 256
          %s220 = scalar_lea.vmem [#allocation3], %s219
          %s221 = sadd.s32 %s24, %s25
          %s222 = smul.u32 32, %s221
          %s223 = smul.u32 2, %s26
          %s225 = ssub.s32 4096, 4096
          %226 = vsyncadd %s217, %s225
          %s227 = smul.addr %s222, 4
          %s228 = sadd.s32 %s223, %s227
          %s229 = smul.addr %s228, 64
          %s230 = scalar_lea.hbm %s0, %s229
          %s231 = sshll.u32 %s220, 4
          %s232 = int_to_ptr.vmem [resolvable:$true] %s231
          %237 = dma.hbm_to_vmem [thread:$0]  %s230, 4096, %s232, %s217, 256, 128, 8
        $region28: #{tpu_custom_call.1} parent=23 // pred_fallthru
          _
        // Predicated region
        $region29: #{tpu_custom_call.1} parent=23 // pred_check
          %p238 = pneg %p86
        $region30: #{tpu_custom_call.1} parent=23 // pred_check_branch
          %240 = sbr.rel (%p238) target = $region32
        $region31: #{tpu_custom_call.1} parent=23 // pred_region
          %s241 = smul.u32 32, %s26
          %p242 = scmp.lt.s32.totalorder %s241, 63
          %s243 = scalar_select %p242, %s241, 63
          %s244 = smul.addr %s243, 4
          %s245 = scalar_lea.vmem %s1, %s244
          %s246 = smul.u32 32, %s26
        $region32: #{tpu_custom_call.1} parent=23 // pred_fallthru
          _
        // Predicated region
        $region33: #{tpu_custom_call.1} parent=23 // pred_check
          %p247 = pneg %p135
        $region34: #{tpu_custom_call.1} parent=23 // pred_check_branch
          %249 = sbr.rel (%p247) target = $region36
        $region35: #{tpu_custom_call.1} parent=23 // pred_region
          %s250 = sadd.s32 %s24, %s25
          %s251 = smul.u32 32, %s250
          %p252 = scmp.lt.s32.totalorder %s251, 63
          %s253 = scalar_select %p252, %s251, 63
          %s254 = smul.addr %s253, 4
          %s255 = scalar_lea.vmem %s3, %s254
          %s256 = sadd.s32 %s24, %s25
          %s257 = smul.u32 32, %s256
        $region36: #{tpu_custom_call.1} parent=23 // pred_fallthru
          _
      $region24: #{tpu_custom_call.1} parent=5 // pred_fallthru
        _
      %p258 = scmp.le.s32.totalorder 1, %s17
      %p259 = scmp.lt.s32.totalorder %s17, 5
      %p260 = pnand %p258, %p259
      %p261 = pneg %p260
      // Predicated region
      $region37: #{tpu_custom_call.1} parent=5 // pred_check
        _
      $region38: #{tpu_custom_call.1} parent=5 // pred_check_branch
        %263 = sbr.rel (%p260) target = $region40
      $region39: #{tpu_custom_call.1} parent=5 // pred_region
        %s264 = ssub.s32 %s17, 1
        %s265 = sand.u32 %s53, 1
        %s266 = scalar_lea.sflag [#allocation4], %s265
        %s267 = sand.u32 %s53, 1
        %s268 = smul.addr %s267, 256
        %s269 = scalar_lea.vmem [#allocation3], %s268
        // Predicated region
        $region41: #{tpu_custom_call.1} parent=39 // pred_check
          %p270 = pneg %p66
        $region42: #{tpu_custom_call.1} parent=39 // pred_check_branch
          %272 = sbr.rel (%p270) target = $region44
        $region43: #{tpu_custom_call.1} parent=39 // pred_region
          %273 = dma.done %s266, 4096
        $region44: #{tpu_custom_call.1} parent=39 // pred_fallthru
          _
        %s274 = sand.u32 %s53, 1
        %s275 = scalar_lea.sflag [#allocation4], %s274
        %s276 = sand.u32 %s53, 1
        %s277 = smul.addr %s276, 256
        %s278 = scalar_lea.vmem [#allocation3], %s277
        %p279 = pneg %p66
        %p280 = pneg %p63
        %s281 = smul.u32 32, %s29
        %p282 = scmp.lt.s32.totalorder %s281, 63
        %s283 = scalar_select %p282, %s281, 63
        %s284 = smul.addr %s283, 4
        %s285 = scalar_lea.vmem %s1, %s284
        %p286 = pneg %p92
        %p287 = pneg %p89
        %p288 = pneg %p113
        %p289 = pneg %p110
        %s290 = sadd.s32 %s27, %s28
        %s291 = smul.u32 32, %s290
        %p292 = scmp.lt.s32.totalorder %s291, 63
        %s293 = scalar_select %p292, %s291, 63
        %s294 = smul.addr %s293, 4
        %s295 = scalar_lea.vmem %s3, %s294
        %p296 = pneg %p141
        %p297 = pneg %p138
        %p298 = pneg %p162
        %p299 = pneg %p159
        %p300 = pneg %p188
        %p301 = pneg %p185
        %s302 = sand.u32 %s175, 1
        %s303 = scalar_lea.sflag [#allocation5], %s302
        %s304 = sand.u32 %s175, 1
        %s305 = smul.addr %s304, 8
        %s306 = scalar_lea.vmem [#allocation6], %s305
        %s307 = sadd.s32 %s27, %s28
        %s308 = smul.u32 32, %s307
        %s309 = smul.u32 2, %s29
        %s310 = smul.u32 32, %s29
        %p311 = scmp.lt.s32.totalorder %s310, 63
        %s312 = scalar_select %p311, %s310, 63
        %s313 = smul.addr %s312, 4
        %s314 = scalar_lea.vmem %s1, %s313
        %s315 = smul.u32 32, %s29
        %s316 = sadd.s32 %s27, %s28
        %s317 = smul.u32 32, %s316
        %p318 = scmp.lt.s32.totalorder %s317, 63
        %s319 = scalar_select %p318, %s317, 63
        %s320 = smul.addr %s319, 4
        %s321 = scalar_lea.vmem %s3, %s320
        %s322 = sadd.s32 %s27, %s28
        %s323 = smul.u32 32, %s322
        %p325 = scmp.eq.s32.totalorder %s28, 0
        %p326 = scmp.eq.s32.totalorder %s29, 0
        %p327 = pnand %p325, %p326
        %p328 = pneg %p327
        // Predicated region
        $region45: #{tpu_custom_call.1} parent=39 // pred_check
          _
        $region46: #{tpu_custom_call.1} parent=39 // pred_check_branch
          %330 = sbr.rel (%p327) target = $region48
        $region47: #{tpu_custom_call.1} parent=39 // pred_region
          %331 = vst [vmem:[%s306] sm:$0xff] 0.0
        $region48: #{tpu_custom_call.1} parent=39 // pred_fallthru
          _
        // Predicated region
        $region49: #{tpu_custom_call.1} parent=39 // pred_check
          %p332 = pneg %p326
        $region50: #{tpu_custom_call.1} parent=39 // pred_check_branch
          %334 = sbr.rel (%p332) target = $region52
        $region51: #{tpu_custom_call.1} parent=39 // pred_region
          %335 = vst [vmem:[#allocation2] sm:$0xff] 0.0
          %336 = vst [vmem:[#allocation2 + $0x8] sm:$0xff] 0.0
          %337 = vst [vmem:[#allocation2 + $0x10] sm:$0xff] 0.0
          %338 = vst [vmem:[#allocation2 + $0x18] sm:$0xff] 0.0
          %339 = vst [vmem:[#allocation2 + $0x20] sm:$0xff] 0.0
          %340 = vst [vmem:[#allocation2 + $0x28] sm:$0xff] 0.0
          %341 = vst [vmem:[#allocation2 + $0x30] sm:$0xff] 0.0
          %342 = vst [vmem:[#allocation2 + $0x38] sm:$0xff] 0.0
          %343 = vst [vmem:[#allocation2 + $0x40] sm:$0xff] 0.0
          %344 = vst [vmem:[#allocation2 + $0x48] sm:$0xff] 0.0
          %345 = vst [vmem:[#allocation2 + $0x50] sm:$0xff] 0.0
          %346 = vst [vmem:[#allocation2 + $0x58] sm:$0xff] 0.0
          %347 = vst [vmem:[#allocation2 + $0x60] sm:$0xff] 0.0
          %348 = vst [vmem:[#allocation2 + $0x68] sm:$0xff] 0.0
          %349 = vst [vmem:[#allocation2 + $0x70] sm:$0xff] 0.0
          %350 = vst [vmem:[#allocation2 + $0x78] sm:$0xff] 0.0
          %351 = vst [vmem:[#allocation2 + $0x80] sm:$0xff] 0.0
          %352 = vst [vmem:[#allocation2 + $0x88] sm:$0xff] 0.0
          %353 = vst [vmem:[#allocation2 + $0x90] sm:$0xff] 0.0
          %354 = vst [vmem:[#allocation2 + $0x98] sm:$0xff] 0.0
          %355 = vst [vmem:[#allocation2 + $0xa0] sm:$0xff] 0.0
          %356 = vst [vmem:[#allocation2 + $0xa8] sm:$0xff] 0.0
          %357 = vst [vmem:[#allocation2 + $0xb0] sm:$0xff] 0.0
          %358 = vst [vmem:[#allocation2 + $0xb8] sm:$0xff] 0.0
          %359 = vst [vmem:[#allocation2 + $0xc0] sm:$0xff] 0.0
          %360 = vst [vmem:[#allocation2 + $0xc8] sm:$0xff] 0.0
          %361 = vst [vmem:[#allocation2 + $0xd0] sm:$0xff] 0.0
          %362 = vst [vmem:[#allocation2 + $0xd8] sm:$0xff] 0.0
          %363 = vst [vmem:[#allocation2 + $0xe0] sm:$0xff] 0.0
          %364 = vst [vmem:[#allocation2 + $0xe8] sm:$0xff] 0.0
          %365 = vst [vmem:[#allocation2 + $0xf0] sm:$0xff] 0.0
          %366 = vst [vmem:[#allocation2 + $0xf8] sm:$0xff] 0.0
        $region52: #{tpu_custom_call.1} parent=39 // pred_fallthru
          _
        %v367 = vld [vmem:[#allocation2] sm:$0xff]
        %v368 = vld [vmem:[#allocation2 + $0x8] sm:$0xff]
        %v369 = vld [vmem:[#allocation2 + $0x10] sm:$0xff]
        %v370 = vld [vmem:[#allocation2 + $0x18] sm:$0xff]
        %v371 = vld [vmem:[#allocation2 + $0x20] sm:$0xff]
        %v372 = vld [vmem:[#allocation2 + $0x28] sm:$0xff]
        %v373 = vld [vmem:[#allocation2 + $0x30] sm:$0xff]
        %v374 = vld [vmem:[#allocation2 + $0x38] sm:$0xff]
        %v375 = vld [vmem:[#allocation2 + $0x40] sm:$0xff]
        %v376 = vld [vmem:[#allocation2 + $0x48] sm:$0xff]
        %v377 = vld [vmem:[#allocation2 + $0x50] sm:$0xff]
        %v378 = vld [vmem:[#allocation2 + $0x58] sm:$0xff]
        %v379 = vld [vmem:[#allocation2 + $0x60] sm:$0xff]
        %v380 = vld [vmem:[#allocation2 + $0x68] sm:$0xff]
        %v381 = vld [vmem:[#allocation2 + $0x70] sm:$0xff]
        %v382 = vld [vmem:[#allocation2 + $0x78] sm:$0xff]
        %v383 = vld [vmem:[#allocation2 + $0x80] sm:$0xff]
        %v384 = vld [vmem:[#allocation2 + $0x88] sm:$0xff]
        %v385 = vld [vmem:[#allocation2 + $0x90] sm:$0xff]
        %v386 = vld [vmem:[#allocation2 + $0x98] sm:$0xff]
        %v387 = vld [vmem:[#allocation2 + $0xa0] sm:$0xff]
        %v388 = vld [vmem:[#allocation2 + $0xa8] sm:$0xff]
        %v389 = vld [vmem:[#allocation2 + $0xb0] sm:$0xff]
        %v390 = vld [vmem:[#allocation2 + $0xb8] sm:$0xff]
        %v391 = vld [vmem:[#allocation2 + $0xc0] sm:$0xff]
        %v392 = vld [vmem:[#allocation2 + $0xc8] sm:$0xff]
        %v393 = vld [vmem:[#allocation2 + $0xd0] sm:$0xff]
        %v394 = vld [vmem:[#allocation2 + $0xd8] sm:$0xff]
        %v395 = vld [vmem:[#allocation2 + $0xe0] sm:$0xff]
        %v396 = vld [vmem:[#allocation2 + $0xe8] sm:$0xff]
        %v397 = vld [vmem:[#allocation2 + $0xf0] sm:$0xff]
        %v398 = vld [vmem:[#allocation2 + $0xf8] sm:$0xff]
        %v399 = vld [vmem:[%s269] sm:$0xff]
        %v400 = vld [vmem:[%s269 + $0x8] sm:$0xff]
        %v401 = vld [vmem:[%s269 + $0x10] sm:$0xff]
        %v402 = vld [vmem:[%s269 + $0x18] sm:$0xff]
        %v403 = vld [vmem:[%s269 + $0x20] sm:$0xff]
        %v404 = vld [vmem:[%s269 + $0x28] sm:$0xff]
        %v405 = vld [vmem:[%s269 + $0x30] sm:$0xff]
        %v406 = vld [vmem:[%s269 + $0x38] sm:$0xff]
        %v407 = vld [vmem:[%s269 + $0x40] sm:$0xff]
        %v408 = vld [vmem:[%s269 + $0x48] sm:$0xff]
        %v409 = vld [vmem:[%s269 + $0x50] sm:$0xff]
        %v410 = vld [vmem:[%s269 + $0x58] sm:$0xff]
        %v411 = vld [vmem:[%s269 + $0x60] sm:$0xff]
        %v412 = vld [vmem:[%s269 + $0x68] sm:$0xff]
        %v413 = vld [vmem:[%s269 + $0x70] sm:$0xff]
        %v414 = vld [vmem:[%s269 + $0x78] sm:$0xff]
        %v415 = vld [vmem:[%s269 + $0x80] sm:$0xff]
        %v416 = vld [vmem:[%s269 + $0x88] sm:$0xff]
        %v417 = vld [vmem:[%s269 + $0x90] sm:$0xff]
        %v418 = vld [vmem:[%s269 + $0x98] sm:$0xff]
        %v419 = vld [vmem:[%s269 + $0xa0] sm:$0xff]
        %v420 = vld [vmem:[%s269 + $0xa8] sm:$0xff]
        %v421 = vld [vmem:[%s269 + $0xb0] sm:$0xff]
        %v422 = vld [vmem:[%s269 + $0xb8] sm:$0xff]
        %v423 = vld [vmem:[%s269 + $0xc0] sm:$0xff]
        %v424 = vld [vmem:[%s269 + $0xc8] sm:$0xff]
        %v425 = vld [vmem:[%s269 + $0xd0] sm:$0xff]
        %v426 = vld [vmem:[%s269 + $0xd8] sm:$0xff]
        %v427 = vld [vmem:[%s269 + $0xe0] sm:$0xff]
        %v428 = vld [vmem:[%s269 + $0xe8] sm:$0xff]
        %v429 = vld [vmem:[%s269 + $0xf0] sm:$0xff]
        %v430 = vld [vmem:[%s269 + $0xf8] sm:$0xff]
        %v431 = vld [vmem:[%s314] sm:$0xf]
        %v432 = vld [vmem:[%s314 + $0x4] sm:$0xf]
        %v433 = vld [vmem:[%s314 + $0x8] sm:$0xf]
        %v434 = vld [vmem:[%s314 + $0xc] sm:$0xf]
        %v435 = vld [vmem:[%s314 + $0x10] sm:$0xf]
        %v436 = vld [vmem:[%s314 + $0x14] sm:$0xf]
        %v437 = vld [vmem:[%s314 + $0x18] sm:$0xf]
        %v438 = vld [vmem:[%s314 + $0x1c] sm:$0xf]
        %v439 = vld [vmem:[%s314 + $0x20] sm:$0xf]
        %v440 = vld [vmem:[%s314 + $0x24] sm:$0xf]
        %v441 = vld [vmem:[%s314 + $0x28] sm:$0xf]
        %v442 = vld [vmem:[%s314 + $0x2c] sm:$0xf]
        %v443 = vld [vmem:[%s314 + $0x30] sm:$0xf]
        %v444 = vld [vmem:[%s314 + $0x34] sm:$0xf]
        %v445 = vld [vmem:[%s314 + $0x38] sm:$0xf]
        %v446 = vld [vmem:[%s314 + $0x3c] sm:$0xf]
        %v447 = vld [vmem:[%s314 + $0x40] sm:$0xf]
        %v448 = vld [vmem:[%s314 + $0x44] sm:$0xf]
        %v449 = vld [vmem:[%s314 + $0x48] sm:$0xf]
        %v450 = vld [vmem:[%s314 + $0x4c] sm:$0xf]
        %v451 = vld [vmem:[%s314 + $0x50] sm:$0xf]
        %v452 = vld [vmem:[%s314 + $0x54] sm:$0xf]
        %v453 = vld [vmem:[%s314 + $0x58] sm:$0xf]
        %v454 = vld [vmem:[%s314 + $0x5c] sm:$0xf]
        %v455 = vld [vmem:[%s314 + $0x60] sm:$0xf]
        %v456 = vld [vmem:[%s314 + $0x64] sm:$0xf]
        %v457 = vld [vmem:[%s314 + $0x68] sm:$0xf]
        %v458 = vld [vmem:[%s314 + $0x6c] sm:$0xf]
        %v459 = vld [vmem:[%s314 + $0x70] sm:$0xf]
        %v460 = vld [vmem:[%s314 + $0x74] sm:$0xf]
        %v461 = vld [vmem:[%s314 + $0x78] sm:$0xf]
        %v462 = vld [vmem:[%s314 + $0x7c] sm:$0xf]
        %v495 = vunpack.c.l.b16 %v399
        %v496 = vunpack.c.h.b16 %v399
        %v497 = vunpack.c.l.b16 %v400
        %v498 = vunpack.c.h.b16 %v400
        %v499 = vunpack.c.l.b16 %v401
        %v500 = vunpack.c.h.b16 %v401
        %v501 = vunpack.c.l.b16 %v402
        %v502 = vunpack.c.h.b16 %v402
        %v503 = vunpack.c.l.b16 %v403
        %v504 = vunpack.c.h.b16 %v403
        %v505 = vunpack.c.l.b16 %v404
        %v506 = vunpack.c.h.b16 %v404
        %v507 = vunpack.c.l.b16 %v405
        %v508 = vunpack.c.h.b16 %v405
        %v509 = vunpack.c.l.b16 %v406
        %v510 = vunpack.c.h.b16 %v406
        %v511 = vunpack.c.l.b16 %v407
        %v512 = vunpack.c.h.b16 %v407
        %v513 = vunpack.c.l.b16 %v408
        %v514 = vunpack.c.h.b16 %v408
        %v515 = vunpack.c.l.b16 %v409
        %v516 = vunpack.c.h.b16 %v409
        %v517 = vunpack.c.l.b16 %v410
        %v518 = vunpack.c.h.b16 %v410
        %v519 = vunpack.c.l.b16 %v411
        %v520 = vunpack.c.h.b16 %v411
        %v521 = vunpack.c.l.b16 %v412
        %v522 = vunpack.c.h.b16 %v412
        %v523 = vunpack.c.l.b16 %v413
        %v524 = vunpack.c.h.b16 %v413
        %v525 = vunpack.c.l.b16 %v414
        %v526 = vunpack.c.h.b16 %v414
        %v527 = vunpack.c.l.b16 %v415
        %v528 = vunpack.c.h.b16 %v415
        %v529 = vunpack.c.l.b16 %v416
        %v530 = vunpack.c.h.b16 %v416
        %v531 = vunpack.c.l.b16 %v417
        %v532 = vunpack.c.h.b16 %v417
        %v533 = vunpack.c.l.b16 %v418
        %v534 = vunpack.c.h.b16 %v418
        %v535 = vunpack.c.l.b16 %v419
        %v536 = vunpack.c.h.b16 %v419
        %v537 = vunpack.c.l.b16 %v420
        %v538 = vunpack.c.h.b16 %v420
        %v539 = vunpack.c.l.b16 %v421
        %v540 = vunpack.c.h.b16 %v421
        %v541 = vunpack.c.l.b16 %v422
        %v542 = vunpack.c.h.b16 %v422
        %v543 = vunpack.c.l.b16 %v423
        %v544 = vunpack.c.h.b16 %v423
        %v545 = vunpack.c.l.b16 %v424
        %v546 = vunpack.c.h.b16 %v424
        %v547 = vunpack.c.l.b16 %v425
        %v548 = vunpack.c.h.b16 %v425
        %v549 = vunpack.c.l.b16 %v426
        %v550 = vunpack.c.h.b16 %v426
        %v551 = vunpack.c.l.b16 %v427
        %v552 = vunpack.c.h.b16 %v427
        %v553 = vunpack.c.l.b16 %v428
        %v554 = vunpack.c.h.b16 %v428
        %v555 = vunpack.c.l.b16 %v429
        %v556 = vunpack.c.h.b16 %v429
        %v557 = vunpack.c.l.b16 %v430
        %v558 = vunpack.c.h.b16 %v430
        %v559 = vpack.c.b16 %v497, %v495
        %v560 = vpack.c.b16 %v498, %v496
        %v561 = vpack.c.b16 %v501, %v499
        %v562 = vpack.c.b16 %v502, %v500
        %v563 = vpack.c.b16 %v505, %v503
        %v564 = vpack.c.b16 %v506, %v504
        %v565 = vpack.c.b16 %v509, %v507
        %v566 = vpack.c.b16 %v510, %v508
        %v567 = vpack.c.b16 %v513, %v511
        %v568 = vpack.c.b16 %v514, %v512
        %v569 = vpack.c.b16 %v517, %v515
        %v570 = vpack.c.b16 %v518, %v516
        %v571 = vpack.c.b16 %v521, %v519
        %v572 = vpack.c.b16 %v522, %v520
        %v573 = vpack.c.b16 %v525, %v523
        %v574 = vpack.c.b16 %v526, %v524
        %v575 = vpack.c.b16 %v529, %v527
        %v576 = vpack.c.b16 %v530, %v528
        %v577 = vpack.c.b16 %v533, %v531
        %v578 = vpack.c.b16 %v534, %v532
        %v579 = vpack.c.b16 %v537, %v535
        %v580 = vpack.c.b16 %v538, %v536
        %v581 = vpack.c.b16 %v541, %v539
        %v582 = vpack.c.b16 %v542, %v540
        %v583 = vpack.c.b16 %v545, %v543
        %v584 = vpack.c.b16 %v546, %v544
        %v585 = vpack.c.b16 %v549, %v547
        %v586 = vpack.c.b16 %v550, %v548
        %v587 = vpack.c.b16 %v553, %v551
        %v588 = vpack.c.b16 %v554, %v552
        %v589 = vpack.c.b16 %v557, %v555
        %v590 = vpack.c.b16 %v558, %v556
        %v655 = vunpack.c.l.b16 %v431
        %v656 = vunpack.c.l.b16 %v432
        %v657 = vunpack.c.l.b16 %v433
        %v658 = vunpack.c.l.b16 %v434
        %v659 = vunpack.c.l.b16 %v435
        %v660 = vunpack.c.l.b16 %v436
        %v661 = vunpack.c.l.b16 %v437
        %v662 = vunpack.c.l.b16 %v438
        %v663 = vunpack.c.l.b16 %v439
        %v664 = vunpack.c.l.b16 %v440
        %v665 = vunpack.c.l.b16 %v441
        %v666 = vunpack.c.l.b16 %v442
        %v667 = vunpack.c.l.b16 %v443
        %v668 = vunpack.c.l.b16 %v444
        %v669 = vunpack.c.l.b16 %v445
        %v670 = vunpack.c.l.b16 %v446
        %v671 = vunpack.c.l.b16 %v447
        %v672 = vunpack.c.l.b16 %v448
        %v673 = vunpack.c.l.b16 %v449
        %v674 = vunpack.c.l.b16 %v450
        %v675 = vunpack.c.l.b16 %v451
        %v676 = vunpack.c.l.b16 %v452
        %v677 = vunpack.c.l.b16 %v453
        %v678 = vunpack.c.l.b16 %v454
        %v679 = vunpack.c.l.b16 %v455
        %v680 = vunpack.c.l.b16 %v456
        %v681 = vunpack.c.l.b16 %v457
        %v682 = vunpack.c.l.b16 %v458
        %v683 = vunpack.c.l.b16 %v459
        %v684 = vunpack.c.l.b16 %v460
        %v685 = vunpack.c.l.b16 %v461
        %v686 = vunpack.c.l.b16 %v462
        %v687 = vpack.c.b16 %v656, %v655
        %v688 = vpack.c.b16 %v658, %v657
        %v689 = vpack.c.b16 %v660, %v659
        %v690 = vpack.c.b16 %v662, %v661
        %v691 = vpack.c.b16 %v664, %v663
        %v692 = vpack.c.b16 %v666, %v665
        %v693 = vpack.c.b16 %v668, %v667
        %v694 = vpack.c.b16 %v670, %v669
        %v695 = vpack.c.b16 %v672, %v671
        %v696 = vpack.c.b16 %v674, %v673
        %v697 = vpack.c.b16 %v676, %v675
        %v698 = vpack.c.b16 %v678, %v677
        %v699 = vpack.c.b16 %v680, %v679
        %v700 = vpack.c.b16 %v682, %v681
        %v701 = vpack.c.b16 %v684, %v683
        %v702 = vpack.c.b16 %v686, %v685
        %719 = vmatprep.subr.bf16.mxu0 0
        %720 = vmatpush1.bf16.msra.mxu0 %v687
        %721 = vmatprep.subr.bf16.mxu0 0
        %722 = vmatpush1.bf16.msra.mxu0 %v688
        %723 = vmatprep.subr.bf16.mxu0 0
        %724 = vmatpush1.bf16.msra.mxu0 %v689
        %725 = vmatprep.subr.bf16.mxu0 0
        %726 = vmatpush1.bf16.msra.mxu0 %v690
        %727 = vmatprep.subr.bf16.mxu0 0
        %728 = vmatpush1.bf16.msra.mxu0 %v691
        %729 = vmatprep.subr.bf16.mxu0 0
        %730 = vmatpush1.bf16.msra.mxu0 %v692
        %731 = vmatprep.subr.bf16.mxu0 0
        %732 = vmatpush1.bf16.msra.mxu0 %v693
        %733 = vmatprep.subr.bf16.mxu0 0
        %734 = vmatpush1.bf16.msra.mxu0 %v694
        %735 = vmatprep.subr.bf16.mxu0 0
        %736 = vmatpush1.bf16.msra.mxu0 %v695
        %737 = vmatprep.subr.bf16.mxu0 0
        %738 = vmatpush1.bf16.msra.mxu0 %v696
        %739 = vmatprep.subr.bf16.mxu0 0
        %740 = vmatpush1.bf16.msra.mxu0 %v697
        %741 = vmatprep.subr.bf16.mxu0 0
        %742 = vmatpush1.bf16.msra.mxu0 %v698
        %743 = vmatprep.subr.bf16.mxu0 0
        %744 = vmatpush1.bf16.msra.mxu0 %v699
        %745 = vmatprep.subr.bf16.mxu0 0
        %746 = vmatpush1.bf16.msra.mxu0 %v700
        %747 = vmatprep.subr.bf16.mxu0 0
        %748 = vmatpush1.bf16.msra.mxu0 %v701
        %749 = vmatprep.subr.bf16.mxu0 0
        %750 = vmatpush1.bf16.msra.mxu0 %v702
        %751 = vmatprep.mubr.bf16.mxu0 %v560
        %752 = vmatmul.mubr.bf16.gmra.mrb[0].mxu0 %v559
        %v753 = vpop.f32.mrb[0].mxu0
        %v754 = vadd.f32 0.0, %v753
        %v755 = vpop.f32.mrb[0].mxu0
        %v756 = vpop.f32.mrb[0].mxu0
        %v757 = vadd.f32 0.0, %v756
        %v758 = vpop.f32.mrb[0].mxu0
        %759 = vmatprep.mubr.bf16.mxu0 %v562
        %760 = vmatmul.mubr.bf16.gmra.mrb[0].mxu0 %v561
        %v761 = vpop.f32.mrb[0].mxu0
        %v762 = vadd.f32 0.0, %v761
        %v763 = vpop.f32.mrb[0].mxu0
        %v764 = vpop.f32.mrb[0].mxu0
        %v765 = vadd.f32 0.0, %v764
        %v766 = vpop.f32.mrb[0].mxu0
        %767 = vmatprep.mubr.bf16.mxu0 %v564
        %768 = vmatmul.mubr.bf16.gmra.mrb[0].mxu0 %v563
        %v769 = vpop.f32.mrb[0].mxu0
        %v770 = vadd.f32 0.0, %v769
        %v771 = vpop.f32.mrb[0].mxu0
        %v772 = vpop.f32.mrb[0].mxu0
        %v773 = vadd.f32 0.0, %v772
        %v774 = vpop.f32.mrb[0].mxu0
        %775 = vmatprep.mubr.bf16.mxu0 %v566
        %776 = vmatmul.mubr.bf16.gmra.mrb[0].mxu0 %v565
        %v777 = vpop.f32.mrb[0].mxu0
        %v778 = vadd.f32 0.0, %v777
        %v779 = vpop.f32.mrb[0].mxu0
        %v780 = vpop.f32.mrb[0].mxu0
        %v781 = vadd.f32 0.0, %v780
        %v782 = vpop.f32.mrb[0].mxu0
        %783 = vmatprep.mubr.bf16.mxu0 %v568
        %784 = vmatmul.mubr.bf16.gmra.mrb[0].mxu0 %v567
        %v785 = vpop.f32.mrb[0].mxu0
        %v786 = vadd.f32 0.0, %v785
        %v787 = vpop.f32.mrb[0].mxu0
        %v788 = vpop.f32.mrb[0].mxu0
        %v789 = vadd.f32 0.0, %v788
        %v790 = vpop.f32.mrb[0].mxu0
        %791 = vmatprep.mubr.bf16.mxu0 %v570
        %792 = vmatmul.mubr.bf16.gmra.mrb[0].mxu0 %v569
        %v793 = vpop.f32.mrb[0].mxu0
        %v794 = vadd.f32 0.0, %v793
        %v795 = vpop.f32.mrb[0].mxu0
        %v796 = vpop.f32.mrb[0].mxu0
        %v797 = vadd.f32 0.0, %v796
        %v798 = vpop.f32.mrb[0].mxu0
        %799 = vmatprep.mubr.bf16.mxu0 %v572
        %800 = vmatmul.mubr.bf16.gmra.mrb[0].mxu0 %v571
        %v801 = vpop.f32.mrb[0].mxu0
        %v802 = vadd.f32 0.0, %v801
        %v803 = vpop.f32.mrb[0].mxu0
        %v804 = vpop.f32.mrb[0].mxu0
        %v805 = vadd.f32 0.0, %v804
        %v806 = vpop.f32.mrb[0].mxu0
        %807 = vmatprep.mubr.bf16.mxu0 %v574
        %808 = vmatmul.mubr.bf16.gmra.mrb[0].mxu0 %v573
        %v809 = vpop.f32.mrb[0].mxu0
        %v810 = vadd.f32 0.0, %v809
        %v811 = vpop.f32.mrb[0].mxu0
        %v812 = vpop.f32.mrb[0].mxu0
        %v813 = vadd.f32 0.0, %v812
        %v814 = vpop.f32.mrb[0].mxu0
        %815 = vmatprep.mubr.bf16.mxu0 %v576
        %816 = vmatmul.mubr.bf16.gmra.mrb[0].mxu0 %v575
        %v817 = vpop.f32.mrb[0].mxu0
        %v818 = vadd.f32 0.0, %v817
        %v819 = vpop.f32.mrb[0].mxu0
        %v820 = vpop.f32.mrb[0].mxu0
        %v821 = vadd.f32 0.0, %v820
        %v822 = vpop.f32.mrb[0].mxu0
        %823 = vmatprep.mubr.bf16.mxu0 %v578
        %824 = vmatmul.mubr.bf16.gmra.mrb[0].mxu0 %v577
        %v825 = vpop.f32.mrb[0].mxu0
        %v826 = vadd.f32 0.0, %v825
        %v827 = vpop.f32.mrb[0].mxu0
        %v828 = vpop.f32.mrb[0].mxu0
        %v829 = vadd.f32 0.0, %v828
        %v830 = vpop.f32.mrb[0].mxu0
        %831 = vmatprep.mubr.bf16.mxu0 %v580
        %832 = vmatmul.mubr.bf16.gmra.mrb[0].mxu0 %v579
        %v833 = vpop.f32.mrb[0].mxu0
        %v834 = vadd.f32 0.0, %v833
        %v835 = vpop.f32.mrb[0].mxu0
        %v836 = vpop.f32.mrb[0].mxu0
        %v837 = vadd.f32 0.0, %v836
        %v838 = vpop.f32.mrb[0].mxu0
        %839 = vmatprep.mubr.bf16.mxu0 %v582
        %840 = vmatmul.mubr.bf16.gmra.mrb[0].mxu0 %v581
        %v841 = vpop.f32.mrb[0].mxu0
        %v842 = vadd.f32 0.0, %v841
        %v843 = vpop.f32.mrb[0].mxu0
        %v844 = vpop.f32.mrb[0].mxu0
        %v845 = vadd.f32 0.0, %v844
        %v846 = vpop.f32.mrb[0].mxu0
        %847 = vmatprep.mubr.bf16.mxu0 %v584
        %848 = vmatmul.mubr.bf16.gmra.mrb[0].mxu0 %v583
        %v849 = vpop.f32.mrb[0].mxu0
        %v850 = vadd.f32 0.0, %v849
        %v851 = vpop.f32.mrb[0].mxu0
        %v852 = vpop.f32.mrb[0].mxu0
        %v853 = vadd.f32 0.0, %v852
        %v854 = vpop.f32.mrb[0].mxu0
        %855 = vmatprep.mubr.bf16.mxu0 %v586
        %856 = vmatmul.mubr.bf16.gmra.mrb[0].mxu0 %v585
        %v857 = vpop.f32.mrb[0].mxu0
        %v858 = vadd.f32 0.0, %v857
        %v859 = vpop.f32.mrb[0].mxu0
        %v860 = vpop.f32.mrb[0].mxu0
        %v861 = vadd.f32 0.0, %v860
        %v862 = vpop.f32.mrb[0].mxu0
        %863 = vmatprep.mubr.bf16.mxu0 %v588
        %864 = vmatmul.mubr.bf16.gmra.mrb[0].mxu0 %v587
        %v865 = vpop.f32.mrb[0].mxu0
        %v866 = vadd.f32 0.0, %v865
        %v867 = vpop.f32.mrb[0].mxu0
        %v868 = vpop.f32.mrb[0].mxu0
        %v869 = vadd.f32 0.0, %v868
        %v870 = vpop.f32.mrb[0].mxu0
        %871 = vmatprep.mubr.bf16.mxu0 %v590
        %872 = vmatmul.mubr.bf16.gmra.mrb[0].mxu0 %v589
        %v873 = vpop.f32.mrb[0].mxu0
        %v874 = vadd.f32 0.0, %v873
        %v875 = vpop.f32.mrb[0].mxu0
        %v876 = vpop.f32.mrb[0].mxu0
        %v877 = vadd.f32 0.0, %v876
        %v878 = vpop.f32.mrb[0].mxu0
        %879 = vdwg.mxu0
        %v880 = vadd.f32 %v367, %v754
        %v881 = vadd.f32 %v368, %v757
        %v882 = vadd.f32 %v369, %v762
        %v883 = vadd.f32 %v370, %v765
        %v884 = vadd.f32 %v371, %v770
        %v885 = vadd.f32 %v372, %v773
        %v886 = vadd.f32 %v373, %v778
        %v887 = vadd.f32 %v374, %v781
        %v888 = vadd.f32 %v375, %v786
        %v889 = vadd.f32 %v376, %v789
        %v890 = vadd.f32 %v377, %v794
        %v891 = vadd.f32 %v378, %v797
        %v892 = vadd.f32 %v379, %v802
        %v893 = vadd.f32 %v380, %v805
        %v894 = vadd.f32 %v381, %v810
        %v895 = vadd.f32 %v382, %v813
        %v896 = vadd.f32 %v383, %v818
        %v897 = vadd.f32 %v384, %v821
        %v898 = vadd.f32 %v385, %v826
        %v899 = vadd.f32 %v386, %v829
        %v900 = vadd.f32 %v387, %v834
        %v901 = vadd.f32 %v388, %v837
        %v902 = vadd.f32 %v389, %v842
        %v903 = vadd.f32 %v390, %v845
        %v904 = vadd.f32 %v391, %v850
        %v905 = vadd.f32 %v392, %v853
        %v906 = vadd.f32 %v393, %v858
        %v907 = vadd.f32 %v394, %v861
        %v908 = vadd.f32 %v395, %v866
        %v909 = vadd.f32 %v396, %v869
        %v910 = vadd.f32 %v397, %v874
        %v911 = vadd.f32 %v398, %v877
        %912 = vst [vmem:[#allocation2] sm:$0xff] %v880
        %913 = vst [vmem:[#allocation2 + $0x8] sm:$0xff] %v881
        %914 = vst [vmem:[#allocation2 + $0x10] sm:$0xff] %v882
        %915 = vst [vmem:[#allocation2 + $0x18] sm:$0xff] %v883
        %916 = vst [vmem:[#allocation2 + $0x20] sm:$0xff] %v884
        %917 = vst [vmem:[#allocation2 + $0x28] sm:$0xff] %v885
        %918 = vst [vmem:[#allocation2 + $0x30] sm:$0xff] %v886
        %919 = vst [vmem:[#allocation2 + $0x38] sm:$0xff] %v887
        %920 = vst [vmem:[#allocation2 + $0x40] sm:$0xff] %v888
        %921 = vst [vmem:[#allocation2 + $0x48] sm:$0xff] %v889
        %922 = vst [vmem:[#allocation2 + $0x50] sm:$0xff] %v890
        %923 = vst [vmem:[#allocation2 + $0x58] sm:$0xff] %v891
        %924 = vst [vmem:[#allocation2 + $0x60] sm:$0xff] %v892
        %925 = vst [vmem:[#allocation2 + $0x68] sm:$0xff] %v893
        %926 = vst [vmem:[#allocation2 + $0x70] sm:$0xff] %v894
        %927 = vst [vmem:[#allocation2 + $0x78] sm:$0xff] %v895
        %928 = vst [vmem:[#allocation2 + $0x80] sm:$0xff] %v896
        %929 = vst [vmem:[#allocation2 + $0x88] sm:$0xff] %v897
        %930 = vst [vmem:[#allocation2 + $0x90] sm:$0xff] %v898
        %931 = vst [vmem:[#allocation2 + $0x98] sm:$0xff] %v899
        %932 = vst [vmem:[#allocation2 + $0xa0] sm:$0xff] %v900
        %933 = vst [vmem:[#allocation2 + $0xa8] sm:$0xff] %v901
        %934 = vst [vmem:[#allocation2 + $0xb0] sm:$0xff] %v902
        %935 = vst [vmem:[#allocation2 + $0xb8] sm:$0xff] %v903
        %936 = vst [vmem:[#allocation2 + $0xc0] sm:$0xff] %v904
        %937 = vst [vmem:[#allocation2 + $0xc8] sm:$0xff] %v905
        %938 = vst [vmem:[#allocation2 + $0xd0] sm:$0xff] %v906
        %939 = vst [vmem:[#allocation2 + $0xd8] sm:$0xff] %v907
        %940 = vst [vmem:[#allocation2 + $0xe0] sm:$0xff] %v908
        %941 = vst [vmem:[#allocation2 + $0xe8] sm:$0xff] %v909
        %942 = vst [vmem:[#allocation2 + $0xf0] sm:$0xff] %v910
        %943 = vst [vmem:[#allocation2 + $0xf8] sm:$0xff] %v911
        %p944 = scmp.eq.s32.totalorder %s29, 1
        // Predicated region
        $region53: #{tpu_custom_call.1} parent=39 // pred_check
          %p945 = pneg %p944
        $region54: #{tpu_custom_call.1} parent=39 // pred_check_branch
          %947 = sbr.rel (%p945) target = $region56
        $region55: #{tpu_custom_call.1} parent=39 // pred_region
          %v948 = vld [vmem:[#allocation2] sm:$0xff]
          %v949 = vld [vmem:[#allocation2 + $0x8] sm:$0xff]
          %v950 = vld [vmem:[#allocation2 + $0x10] sm:$0xff]
          %v951 = vld [vmem:[#allocation2 + $0x18] sm:$0xff]
          %v952 = vld [vmem:[#allocation2 + $0x20] sm:$0xff]
          %v953 = vld [vmem:[#allocation2 + $0x28] sm:$0xff]
          %v954 = vld [vmem:[#allocation2 + $0x30] sm:$0xff]
          %v955 = vld [vmem:[#allocation2 + $0x38] sm:$0xff]
          %v956 = vld [vmem:[#allocation2 + $0x40] sm:$0xff]
          %v957 = vld [vmem:[#allocation2 + $0x48] sm:$0xff]
          %v958 = vld [vmem:[#allocation2 + $0x50] sm:$0xff]
          %v959 = vld [vmem:[#allocation2 + $0x58] sm:$0xff]
          %v960 = vld [vmem:[#allocation2 + $0x60] sm:$0xff]
          %v961 = vld [vmem:[#allocation2 + $0x68] sm:$0xff]
          %v962 = vld [vmem:[#allocation2 + $0x70] sm:$0xff]
          %v963 = vld [vmem:[#allocation2 + $0x78] sm:$0xff]
          %v964 = vld [vmem:[#allocation2 + $0x80] sm:$0xff]
          %v965 = vld [vmem:[#allocation2 + $0x88] sm:$0xff]
          %v966 = vld [vmem:[#allocation2 + $0x90] sm:$0xff]
          %v967 = vld [vmem:[#allocation2 + $0x98] sm:$0xff]
          %v968 = vld [vmem:[#allocation2 + $0xa0] sm:$0xff]
          %v969 = vld [vmem:[#allocation2 + $0xa8] sm:$0xff]
          %v970 = vld [vmem:[#allocation2 + $0xb0] sm:$0xff]
          %v971 = vld [vmem:[#allocation2 + $0xb8] sm:$0xff]
          %v972 = vld [vmem:[#allocation2 + $0xc0] sm:$0xff]
          %v973 = vld [vmem:[#allocation2 + $0xc8] sm:$0xff]
          %v974 = vld [vmem:[#allocation2 + $0xd0] sm:$0xff]
          %v975 = vld [vmem:[#allocation2 + $0xd8] sm:$0xff]
          %v976 = vld [vmem:[#allocation2 + $0xe0] sm:$0xff]
          %v977 = vld [vmem:[#allocation2 + $0xe8] sm:$0xff]
          %v978 = vld [vmem:[#allocation2 + $0xf0] sm:$0xff]
          %v979 = vld [vmem:[#allocation2 + $0xf8] sm:$0xff]
          %v980 = vld [vmem:[%s2] sm:$0x1]
          %v982 = vlaneseq
          %v983 = vshrl.u32 %v982, 7
          %v984 = vsub.s32 0, %v983
          %v985 = vrot.slane %v980, %v984
          %v987 = vadd.f32 %v948, %v985
          %v988 = vadd.f32 %v949, %v985
          %v989 = vadd.f32 %v950, %v985
          %v990 = vadd.f32 %v951, %v985
          %v991 = vadd.f32 %v952, %v985
          %v992 = vadd.f32 %v953, %v985
          %v993 = vadd.f32 %v954, %v985
          %v994 = vadd.f32 %v955, %v985
          %v995 = vadd.f32 %v956, %v985
          %v996 = vadd.f32 %v957, %v985
          %v997 = vadd.f32 %v958, %v985
          %v998 = vadd.f32 %v959, %v985
          %v999 = vadd.f32 %v960, %v985
          %v1000 = vadd.f32 %v961, %v985
          %v1001 = vadd.f32 %v962, %v985
          %v1002 = vadd.f32 %v963, %v985
          %v1003 = vadd.f32 %v964, %v985
          %v1004 = vadd.f32 %v965, %v985
          %v1005 = vadd.f32 %v966, %v985
          %v1006 = vadd.f32 %v967, %v985
          %v1007 = vadd.f32 %v968, %v985
          %v1008 = vadd.f32 %v969, %v985
          %v1009 = vadd.f32 %v970, %v985
          %v1010 = vadd.f32 %v971, %v985
          %v1011 = vadd.f32 %v972, %v985
          %v1012 = vadd.f32 %v973, %v985
          %v1013 = vadd.f32 %v974, %v985
          %v1014 = vadd.f32 %v975, %v985
          %v1015 = vadd.f32 %v976, %v985
          %v1016 = vadd.f32 %v977, %v985
          %v1017 = vadd.f32 %v978, %v985
          %v1018 = vadd.f32 %v979, %v985
          %v1019 = vmax.f32 %v987, 0.0
          %v1020 = vmax.f32 %v988, 0.0
          %v1021 = vmax.f32 %v989, 0.0
          %v1022 = vmax.f32 %v990, 0.0
          %v1023 = vmax.f32 %v991, 0.0
          %v1024 = vmax.f32 %v992, 0.0
          %v1025 = vmax.f32 %v993, 0.0
          %v1026 = vmax.f32 %v994, 0.0
          %v1027 = vmax.f32 %v995, 0.0
          %v1028 = vmax.f32 %v996, 0.0
          %v1029 = vmax.f32 %v997, 0.0
          %v1030 = vmax.f32 %v998, 0.0
          %v1031 = vmax.f32 %v999, 0.0
          %v1032 = vmax.f32 %v1000, 0.0
          %v1033 = vmax.f32 %v1001, 0.0
          %v1034 = vmax.f32 %v1002, 0.0
          %v1035 = vmax.f32 %v1003, 0.0
          %v1036 = vmax.f32 %v1004, 0.0
          %v1037 = vmax.f32 %v1005, 0.0
          %v1038 = vmax.f32 %v1006, 0.0
          %v1039 = vmax.f32 %v1007, 0.0
          %v1040 = vmax.f32 %v1008, 0.0
          %v1041 = vmax.f32 %v1009, 0.0
          %v1042 = vmax.f32 %v1010, 0.0
          %v1043 = vmax.f32 %v1011, 0.0
          %v1044 = vmax.f32 %v1012, 0.0
          %v1045 = vmax.f32 %v1013, 0.0
          %v1046 = vmax.f32 %v1014, 0.0
          %v1047 = vmax.f32 %v1015, 0.0
          %v1048 = vmax.f32 %v1016, 0.0
          %v1049 = vmax.f32 %v1017, 0.0
          %v1050 = vmax.f32 %v1018, 0.0
          %v1051 = vld [vmem:[%s306] sm:$0xff]
          %v1052 = vld [vmem:[%s321] sm:$0xf]
          %v1053 = vld [vmem:[%s321 + $0x4] sm:$0xf]
          %v1054 = vld [vmem:[%s321 + $0x8] sm:$0xf]
          %v1055 = vld [vmem:[%s321 + $0xc] sm:$0xf]
          %v1056 = vld [vmem:[%s321 + $0x10] sm:$0xf]
          %v1057 = vld [vmem:[%s321 + $0x14] sm:$0xf]
          %v1058 = vld [vmem:[%s321 + $0x18] sm:$0xf]
          %v1059 = vld [vmem:[%s321 + $0x1c] sm:$0xf]
          %v1060 = vld [vmem:[%s321 + $0x20] sm:$0xf]
          %v1061 = vld [vmem:[%s321 + $0x24] sm:$0xf]
          %v1062 = vld [vmem:[%s321 + $0x28] sm:$0xf]
          %v1063 = vld [vmem:[%s321 + $0x2c] sm:$0xf]
          %v1064 = vld [vmem:[%s321 + $0x30] sm:$0xf]
          %v1065 = vld [vmem:[%s321 + $0x34] sm:$0xf]
          %v1066 = vld [vmem:[%s321 + $0x38] sm:$0xf]
          %v1067 = vld [vmem:[%s321 + $0x3c] sm:$0xf]
          %v1068 = vld [vmem:[%s321 + $0x40] sm:$0xf]
          %v1069 = vld [vmem:[%s321 + $0x44] sm:$0xf]
          %v1070 = vld [vmem:[%s321 + $0x48] sm:$0xf]
          %v1071 = vld [vmem:[%s321 + $0x4c] sm:$0xf]
          %v1072 = vld [vmem:[%s321 + $0x50] sm:$0xf]
          %v1073 = vld [vmem:[%s321 + $0x54] sm:$0xf]
          %v1074 = vld [vmem:[%s321 + $0x58] sm:$0xf]
          %v1075 = vld [vmem:[%s321 + $0x5c] sm:$0xf]
          %v1076 = vld [vmem:[%s321 + $0x60] sm:$0xf]
          %v1077 = vld [vmem:[%s321 + $0x64] sm:$0xf]
          %v1078 = vld [vmem:[%s321 + $0x68] sm:$0xf]
          %v1079 = vld [vmem:[%s321 + $0x6c] sm:$0xf]
          %v1080 = vld [vmem:[%s321 + $0x70] sm:$0xf]
          %v1081 = vld [vmem:[%s321 + $0x74] sm:$0xf]
          %v1082 = vld [vmem:[%s321 + $0x78] sm:$0xf]
          %v1083 = vld [vmem:[%s321 + $0x7c] sm:$0xf]
          %v1084 = vpack.c.bf16 %v1020, %v1019
          %v1085 = vpack.c.bf16 %v1022, %v1021
          %v1086 = vpack.c.bf16 %v1024, %v1023
          %v1087 = vpack.c.bf16 %v1026, %v1025
          %v1088 = vpack.c.bf16 %v1028, %v1027
          %v1089 = vpack.c.bf16 %v1030, %v1029
          %v1090 = vpack.c.bf16 %v1032, %v1031
          %v1091 = vpack.c.bf16 %v1034, %v1033
          %v1092 = vpack.c.bf16 %v1036, %v1035
          %v1093 = vpack.c.bf16 %v1038, %v1037
          %v1094 = vpack.c.bf16 %v1040, %v1039
          %v1095 = vpack.c.bf16 %v1042, %v1041
          %v1096 = vpack.c.bf16 %v1044, %v1043
          %v1097 = vpack.c.bf16 %v1046, %v1045
          %v1098 = vpack.c.bf16 %v1048, %v1047
          %v1099 = vpack.c.bf16 %v1050, %v1049
          %v1132 = vunpack.c.l.b16 %v1052
          %v1133 = vunpack.c.l.b16 %v1053
          %v1134 = vunpack.c.l.b16 %v1054
          %v1135 = vunpack.c.l.b16 %v1055
          %v1136 = vunpack.c.l.b16 %v1056
          %v1137 = vunpack.c.l.b16 %v1057
          %v1138 = vunpack.c.l.b16 %v1058
          %v1139 = vunpack.c.l.b16 %v1059
          %v1140 = vunpack.c.l.b16 %v1060
          %v1141 = vunpack.c.l.b16 %v1061
          %v1142 = vunpack.c.l.b16 %v1062
          %v1143 = vunpack.c.l.b16 %v1063
          %v1144 = vunpack.c.l.b16 %v1064
          %v1145 = vunpack.c.l.b16 %v1065
          %v1146 = vunpack.c.l.b16 %v1066
          %v1147 = vunpack.c.l.b16 %v1067
          %v1148 = vunpack.c.l.b16 %v1068
          %v1149 = vunpack.c.l.b16 %v1069
          %v1150 = vunpack.c.l.b16 %v1070
          %v1151 = vunpack.c.l.b16 %v1071
          %v1152 = vunpack.c.l.b16 %v1072
          %v1153 = vunpack.c.l.b16 %v1073
          %v1154 = vunpack.c.l.b16 %v1074
          %v1155 = vunpack.c.l.b16 %v1075
          %v1156 = vunpack.c.l.b16 %v1076
          %v1157 = vunpack.c.l.b16 %v1077
          %v1158 = vunpack.c.l.b16 %v1078
          %v1159 = vunpack.c.l.b16 %v1079
          %v1160 = vunpack.c.l.b16 %v1080
          %v1161 = vunpack.c.l.b16 %v1081
          %v1162 = vunpack.c.l.b16 %v1082
          %v1163 = vunpack.c.l.b16 %v1083
          %v1164 = vpack.c.b16 %v1133, %v1132
          %v1165 = vpack.c.b16 %v1135, %v1134
          %v1166 = vpack.c.b16 %v1137, %v1136
          %v1167 = vpack.c.b16 %v1139, %v1138
          %v1168 = vpack.c.b16 %v1141, %v1140
          %v1169 = vpack.c.b16 %v1143, %v1142
          %v1170 = vpack.c.b16 %v1145, %v1144
          %v1171 = vpack.c.b16 %v1147, %v1146
          %v1172 = vpack.c.b16 %v1149, %v1148
          %v1173 = vpack.c.b16 %v1151, %v1150
          %v1174 = vpack.c.b16 %v1153, %v1152
          %v1175 = vpack.c.b16 %v1155, %v1154
          %v1176 = vpack.c.b16 %v1157, %v1156
          %v1177 = vpack.c.b16 %v1159, %v1158
          %v1178 = vpack.c.b16 %v1161, %v1160
          %v1179 = vpack.c.b16 %v1163, %v1162
          %1196 = vxpose.xlu0.c.b16.start [1/8] %v1164, 128
          %1197 = vxpose.xlu0.c.b16.cont [2/8] %v1165, 128
          %1198 = vxpose.xlu0.c.b16.cont [3/8] %v1166, 128
          %1199 = vxpose.xlu0.c.b16.cont [4/8] %v1167, 128
          %1200 = vxpose.xlu0.c.b16.cont [5/8] %v1168, 128
          %1201 = vxpose.xlu0.c.b16.cont [6/8] %v1169, 128
          %1202 = vxpose.xlu0.c.b16.cont [7/8] %v1170, 128
          %1203 = vxpose.xlu0.c.b16.end [8/8] %v1171, 128
          %v1204 = vpop.trf.xlu0
          %v1205 = vpop.trf.xlu0
          %v1206 = vpop.trf.xlu0
          %v1207 = vpop.trf.xlu0
          %v1208 = vpop.trf.xlu0
          %v1209 = vpop.trf.xlu0
          %v1210 = vpop.trf.xlu0
          %v1211 = vpop.trf.xlu0
          %1212 = vxpose.xlu0.c.b16.start [1/8] %v1172, 128
          %1213 = vxpose.xlu0.c.b16.cont [2/8] %v1173, 128
          %1214 = vxpose.xlu0.c.b16.cont [3/8] %v1174, 128
          %1215 = vxpose.xlu0.c.b16.cont [4/8] %v1175, 128
          %1216 = vxpose.xlu0.c.b16.cont [5/8] %v1176, 128
          %1217 = vxpose.xlu0.c.b16.cont [6/8] %v1177, 128
          %1218 = vxpose.xlu0.c.b16.cont [7/8] %v1178, 128
          %1219 = vxpose.xlu0.c.b16.end [8/8] %v1179, 128
          %v1220 = vpop.trf.xlu0
          %v1221 = vpop.trf.xlu0
          %v1222 = vpop.trf.xlu0
          %v1223 = vpop.trf.xlu0
          %v1224 = vpop.trf.xlu0
          %v1225 = vpop.trf.xlu0
          %v1226 = vpop.trf.xlu0
          %v1227 = vpop.trf.xlu0
          %1228 = vmatprep.subr.bf16.mxu0 0
          %1229 = vmatpush1.bf16.msra.mxu0 %v1084
          %1230 = vmatprep.subr.bf16.mxu0 0
          %1231 = vmatpush1.bf16.msra.mxu0 %v1085
          %1232 = vmatprep.subr.bf16.mxu0 0
          %1233 = vmatpush1.bf16.msra.mxu0 %v1086
          %1234 = vmatprep.subr.bf16.mxu0 0
          %1235 = vmatpush1.bf16.msra.mxu0 %v1087
          %1236 = vmatprep.subr.bf16.mxu0 0
          %1237 = vmatpush1.bf16.msra.mxu0 %v1088
          %1238 = vmatprep.subr.bf16.mxu0 0
          %1239 = vmatpush1.bf16.msra.mxu0 %v1089
          %1240 = vmatprep.subr.bf16.mxu0 0
          %1241 = vmatpush1.bf16.msra.mxu0 %v1090
          %1242 = vmatprep.subr.bf16.mxu0 0
          %1243 = vmatpush1.bf16.msra.mxu0 %v1091
          %1244 = vmatprep.subr.bf16.mxu0 0
          %1245 = vmatpush1.bf16.msra.mxu0 %v1092
          %1246 = vmatprep.subr.bf16.mxu0 0
          %1247 = vmatpush1.bf16.msra.mxu0 %v1093
          %1248 = vmatprep.subr.bf16.mxu0 0
          %1249 = vmatpush1.bf16.msra.mxu0 %v1094
          %1250 = vmatprep.subr.bf16.mxu0 0
          %1251 = vmatpush1.bf16.msra.mxu0 %v1095
          %1252 = vmatprep.subr.bf16.mxu0 0
          %1253 = vmatpush1.bf16.msra.mxu0 %v1096
          %1254 = vmatprep.subr.bf16.mxu0 0
          %1255 = vmatpush1.bf16.msra.mxu0 %v1097
          %1256 = vmatprep.subr.bf16.mxu0 0
          %1257 = vmatpush1.bf16.msra.mxu0 %v1098
          %1258 = vmatprep.subr.bf16.mxu0 0
          %1259 = vmatpush1.bf16.msra.mxu0 %v1099
          %1260 = vmatprep.mubr.bf16.mxu0 %v1220
          %1261 = vmatmul.mubr.bf16.gmra.mrb[0].mxu0 %v1204
          %v1262 = vpop.f32.mrb[0].mxu0
          %v1263 = vadd.f32 0.0, %v1262
          %v1264 = vpop.f32.mrb[0].mxu0
          %v1265 = vpop.f32.mrb[0].mxu0
          %v1266 = vpop.f32.mrb[0].mxu0
          %1267 = vdwg.mxu0
          %v1268 = vadd.f32 %v1051, %v1263
          %1269 = vst [vmem:[%s306] sm:$0xff] %v1268
        $region56: #{tpu_custom_call.1} parent=39 // pred_fallthru
          _
        %p1270 = pnand %p325, %p944
        %p1271 = pneg %p1270
        // Predicated region
        $region57: #{tpu_custom_call.1} parent=39 // pred_check
          _
        $region58: #{tpu_custom_call.1} parent=39 // pred_check_branch
          %1273 = sbr.rel (%p1270) target = $region60
        $region59: #{tpu_custom_call.1} parent=39 // pred_region
          %v1274 = vld [vmem:[%s306] sm:$0xff]
          %v1275 = vld [vmem:[%s4] sm:$0xff]
          %1277 = vset.pattern.permute.xlu0 0
          %1278 = vperm.xlu0 %1277, %v1275
          %v1279 = vpop.permute.xlu0 %1278
          %v1281 = vmul.f32 %v1274, %v1279
          %1282 = vst [vmem:[%s306] sm:$0xff] %v1281
        $region60: #{tpu_custom_call.1} parent=39 // pred_fallthru
          _
        %s1283 = sand.u32 %s175, 1
        %s1284 = scalar_lea.sflag [#allocation5], %s1283
        %s1285 = sand.u32 %s175, 1
        %s1286 = smul.addr %s1285, 8
        %s1287 = scalar_lea.vmem [#allocation6], %s1286
        // Predicated region
        $region61: #{tpu_custom_call.1} parent=39 // pred_check
          %p1288 = pneg %p185
        $region62: #{tpu_custom_call.1} parent=39 // pred_check_branch
          %1290 = sbr.rel (%p1288) target = $region64
        $region63: #{tpu_custom_call.1} parent=39 // pred_region
          %s1292 = ssub.s32 128, 128
          %1293 = vsyncadd %s1284, %s1292
          %s1294 = smul.addr %s27, 128
          %s1295 = scalar_lea.hbm %s5, %s1294
          %s1297 = sshll.u32 %s1287, 4
          %s1298 = int_to_ptr.vmem [resolvable:$true] %s1297
          %1300 = dma.vmem_to_hbm [thread:$0]  %s1298, 128, %s1295, %s1284
        $region64: #{tpu_custom_call.1} parent=39 // pred_fallthru
          _
      $region40: #{tpu_custom_call.1} parent=5 // pred_fallthru
        _
      %p1301 = scmp.le.s32.totalorder 2, %s17
      // Predicated region
      $region65: #{tpu_custom_call.1} parent=5 // pred_check
        %p1302 = pneg %p1301
      $region66: #{tpu_custom_call.1} parent=5 // pred_check_branch
        %1304 = sbr.rel (%p1302) target = $region68
      $region67: #{tpu_custom_call.1} parent=5 // pred_region
        %s1305 = ssub.s32 %s17, 2
        // Predicated region
        $region69: #{tpu_custom_call.1} parent=67 // pred_check
          %p1306 = pneg %p191
        $region70: #{tpu_custom_call.1} parent=67 // pred_check_branch
          %1308 = sbr.rel (%p1306) target = $region72
        $region71: #{tpu_custom_call.1} parent=67 // pred_region
          %s1309 = sand.u32 %s176, 1
          %s1310 = scalar_lea.sflag [#allocation5], %s1309
          %s1311 = sand.u32 %s176, 1
          %s1312 = smul.addr %s1311, 8
          %s1313 = scalar_lea.vmem [#allocation6], %s1312
          %1314 = dma.done %s1310, 128
        $region72: #{tpu_custom_call.1} parent=67 // pred_fallthru
          _
      $region68: #{tpu_custom_call.1} parent=5 // pred_fallthru
        _
    $region6: #{tpu_custom_call.1} parent=1 // loop_footer
      %s21 = sadd.s32 1, %s17
    $region7: #{tpu_custom_call.1} parent=1 // loop_footer_branch
      %16 = sbr.rel target = $region3
    $region8: #{tpu_custom_call.1} parent=1 // loop_exit
      _
    %1315 = vsyncpa [#allocation4], 1
    %s1316 = scalar_lea.sflag [#allocation4], 1
    %1317 = vsyncpa %s1316, 1
    %1318 = vsyncpa [#allocation5], 1
    %s1319 = scalar_lea.sflag [#allocation5], 1
    %1320 = vsyncpa %s1319, 1

</llo_original>
